<compile_context>
chip_gen: v7x
topology: tpu7x:2x2x1
jax: 0.10.0
libtpu: 0.0.40
codegen_flags: <defaults>
</compile_context>

<pallas_src>
import functools

import jax
import jax.numpy as jnp
from jax.experimental import pallas as pl
from jax.experimental.pallas import tpu as pltpu


def _round_up(x, m):
    return (x + m - 1) // m * m


def _residual_kernel(x_ref, w1_ref, w2_ref, m_ref, o_ref, *, W):
    # x_ref : (C_p, L)       channels x (folded batch * H * W), lane-dense
    # w1_ref: (Rh_p, 9*C_p)  flattened 3x3 weights, col = (dh*3+dw)*C_p + c
    # w2_ref: (C_p, Rh_p)    1x1 weights (rows zero-padded to C_p)
    # m_ref : (9, L)         per-tap border-validity masks (1.0 inside, 0.0 pad)
    # o_ref : (C_p, L)
    x = x_ref[...]
    rx = jnp.maximum(x, 0)                              # ReLU(x), input dtype
    L = x.shape[1]

    # im2col (9*C_p, L): shifted taps via XLU roll; masks realize padding=1
    # (and neutralize any wrap across image/batch boundaries).
    taps = []
    for dh in range(3):
        for dw in range(3):
            off = (dh - 1) * W + (dw - 1)
            if off == 0:
                taps.append(rx)                         # center tap: no shift/mask
            else:
                shifted = pltpu.roll(rx, shift=(-off) % L, axis=1)
                taps.append(shifted * m_ref[dh * 3 + dw, :])
    im2col = jnp.concatenate(taps, axis=0)              # 8-sublane aligned stack

    # conv3x3 as a single fused matmul (K = 9*C_p), ReLU, then conv1x1.
    hidden = jnp.maximum(
        jnp.dot(w1_ref[...], im2col, preferred_element_type=jnp.float32), 0.0)
    y = jnp.dot(w2_ref[...], hidden, preferred_element_type=jnp.float32)

    # Residual add in f32, lane-dense unmasked store.
    o_ref[...] = (x.astype(jnp.float32) + y).astype(o_ref.dtype)


def residual_layer(x_nchw, w1_oihw, w2_oihw, *, batch_block=None):
    """x_nchw: (N, Cin, H, W); w1_oihw: (Rh, Cin, 3, 3); w2_oihw: (Cout, Rh, 1, 1)."""
    N, Cin, H, W = x_nchw.shape
    Rh = w1_oihw.shape[0]
    Cout = w2_oihw.shape[0]
    assert Cout == Cin, "residual add requires h_dim == in_dim"
    assert w1_oihw.shape == (Rh, Cin, 3, 3)
    assert w2_oihw.shape == (Cout, Rh, 1, 1)

    hw = H * W
    C_p = _round_up(Cin, 8)
    Rh_p = _round_up(Rh, 8)

    # Grid blocking along the folded batch*HW lane axis:
    #   default -> 2 grid steps when N is even (keeps both v7x TCs busy),
    #   otherwise a single fully fused step (best on single-TC v5e/v6e).
    if batch_block is None:
        batch_block = N // 2 if (N >= 2 and N % 2 == 0) else N
    assert N % batch_block == 0
    n_steps = N // batch_block
    l_blk = batch_block * hw
    l_tot = N * hw
    assert l_blk % 128 == 0, "lane block must be a multiple of 128"
    # TODO(synk): for large H*W or Cin, add an HW-tile grid axis with a 1-row halo
    # and/or a 9-tap accumulation loop; budget the materialized im2col against
    # v7x's 64 MiB VMEM.

    # Channel-major, lane-dense layout: (C_p, N*H*W), zero-padded channels.
    x_cl = jnp.transpose(x_nchw, (1, 0, 2, 3)).reshape(Cin, l_tot)
    x_cl = jnp.pad(x_cl, ((0, C_p - Cin), (0, 0)))

    # Weights: OIHW -> (Rh_p, 9*C_p) with column order (dh*3+dw)*C_p + c, and
    # (C_p, Rh_p) for the 1x1.  Zero pad rows/cols for the padded channels.
    w1t = jnp.transpose(w1_oihw, (0, 2, 3, 1))                       # (Rh, 3, 3, Cin)
    w1t = jnp.pad(w1t, ((0, Rh_p - Rh), (0, 0), (0, 0), (0, C_p - Cin)))
    w1_flat = w1t.reshape(Rh_p, 9 * C_p)
    w2_flat = jnp.pad(w2_oihw[:, :, 0, 0], ((0, C_p - Cout), (0, Rh_p - Rh)))

    # Per-tap border masks: compile-time function of (H, W, batch_block); tile
    # pattern repeats per folded batch element, so one (9, l_blk) slab serves
    # every grid step (constant index_map keeps it resident).
    q = jnp.arange(l_blk, dtype=jnp.int32) % hw
    hh, ww = q // W, q % W
    masks = []
    for dh in range(3):
        for dw in range(3):
            hv, wv = hh + (dh - 1), ww + (dw - 1)
            masks.append((hv >= 0) & (hv < H) & (wv >= 0) & (wv < W))
    masks = jnp.stack(masks, axis=0).astype(x_nchw.dtype)            # (9, l_blk)

    kernel = functools.partial(_residual_kernel, W=W)
    out_cl = pl.pallas_call(
        kernel,
        out_shape=jax.ShapeDtypeStruct((C_p, l_tot), x_nchw.dtype),
        grid=(n_steps,),
        in_specs=[
            pl.BlockSpec((C_p, l_blk), lambda s: (0, s)),
            pl.BlockSpec((Rh_p, 9 * C_p), lambda s: (0, 0)),
            pl.BlockSpec((C_p, Rh_p), lambda s: (0, 0)),
            pl.BlockSpec((9, l_blk), lambda s: (0, 0)),
        ],
        out_specs=pl.BlockSpec((C_p, l_blk), lambda s: (0, s)),
        compiler_params=pltpu.CompilerParams(
            dimension_semantics=("parallel",),
        ),
    )(x_cl, w1_flat, w2_flat, masks)

    # Drop channel padding, restore NCHW.
    out = out_cl[:Cout].reshape(Cout, N, H, W)
    return jnp.transpose(out, (1, 0, 2, 3))


def reference(x_nchw, w1_oihw, w2_oihw):
    """Pure-JAX reference mirroring the PyTorch forward (NCHW / OIHW)."""
    dn = ("NCHW", "OIHW", "NCHW")
    y = jax.nn.relu(x_nchw)
    y = jax.lax.conv_general_dilated(y, w1_oihw, (1, 1), ((1, 1), (1, 1)),
                                     dimension_numbers=dn)
    y = jax.nn.relu(y)
    y = jax.lax.conv_general_dilated(y, w2_oihw, (1, 1), "VALID",
                                     dimension_numbers=dn)
    return x_nchw + y


if __name__ == "__main__":
    # Module hyperparameters: residual add requires h_dim == in_dim.
    in_dim, h_dim, res_h_dim = 4, 4, 8
    N, H, W = 2, 16, 16

    key = jax.random.PRNGKey(0)
    kx, k1, k2 = jax.random.split(key, 3)

    x = jax.random.normal(kx, (N, in_dim, H, W), dtype=jnp.float32)
    # Deterministic synthetic weights (kaiming-ish scale), shapes from nn.Conv2d:
    #   conv1: (res_h_dim, in_dim, 3, 3), conv2: (h_dim, res_h_dim, 1, 1)
    w1 = jax.random.normal(k1, (res_h_dim, in_dim, 3, 3), dtype=jnp.float32)
    w1 = w1 * (1.0 / jnp.sqrt(in_dim * 9.0))
    w2 = jax.random.normal(k2, (h_dim, res_h_dim, 1, 1), dtype=jnp.float32)
    w2 = w2 * (1.0 / jnp.sqrt(float(res_h_dim)))

    out = jax.block_until_ready(residual_layer(x, w1, w2))
    ref = jax.block_until_ready(reference(x, w1, w2))

    assert out.shape == (N, h_dim, H, W)
    assert jnp.allclose(out, ref, atol=1e-4, rtol=1e-4), "mismatch vs reference"
    print("KERNEL_OK")
</pallas_src>

<mosaic_0001>
module attributes {stable_mosaic.version = 11 : i64} {
  func.func @_residual_kernel(%arg0: i32, %arg1: memref<8x256xf32, #tpu.memory_space<vmem>>, %arg2: memref<8x72xf32, #tpu.memory_space<vmem>>, %arg3: memref<8x8xf32, #tpu.memory_space<vmem>>, %arg4: memref<9x256xf32, #tpu.memory_space<vmem>>, %arg5: memref<8x256xf32, #tpu.memory_space<vmem>>) attributes {dimension_semantics = [#tpu.dimension_semantics<parallel>], iteration_bounds = array<i64: 2>, scalar_prefetch = 0 : i64, scratch_operands = 0 : i64, tpu.core_type = #tpu.core_type<tc>, window_params = [{transform_indices = @transform_0, window_bounds = array<i64: 8, 256>}, {pipeline_mode = #tpu.pipeline_mode<synchronous>, transform_indices = @transform_1, window_bounds = array<i64: 8, 72>}, {pipeline_mode = #tpu.pipeline_mode<synchronous>, transform_indices = @transform_2, window_bounds = array<i64: 8, 8>}, {pipeline_mode = #tpu.pipeline_mode<synchronous>, transform_indices = @transform_3, window_bounds = array<i64: 9, 256>}, {transform_indices = @transform_4, window_bounds = array<i64: 8, 256>}]} {
    %c0 = arith.constant 0 : index
    %c0_0 = arith.constant 0 : index
    %0 = vector.load %arg1[%c0, %c0_0] : memref<8x256xf32, #tpu.memory_space<vmem>>, vector<8x256xf32>
    %cst = arith.constant 0.000000e+00 : f32
    %1 = vector.broadcast %cst : f32 to vector<8x256xf32>
    %2 = arith.maximumf %0, %1 : vector<8x256xf32>
    %c17_i32 = arith.constant 17 : i32
    %3 = tpu.dynamic_rotate %2 by %c17_i32 dim 1 : vector<8x256xf32>, i32 -> vector<8x256xf32>
    %c0_1 = arith.constant 0 : index
    %c0_2 = arith.constant 0 : index
    %4 = vector.load %arg4[%c0_1, %c0_2] : memref<9x256xf32, #tpu.memory_space<vmem>>, vector<1x256xf32>
    %5 = vector.shape_cast %4 : vector<1x256xf32> to vector<256xf32>
    %6 = vector.shape_cast %5 : vector<256xf32> to vector<1x256xf32>
    %7 = vector.broadcast %6 : vector<1x256xf32> to vector<8x256xf32>
    %8 = arith.mulf %3, %7 : vector<8x256xf32>
    %c16_i32 = arith.constant 16 : i32
    %9 = tpu.dynamic_rotate %2 by %c16_i32 dim 1 : vector<8x256xf32>, i32 -> vector<8x256xf32>
    %c1 = arith.constant 1 : index
    %c0_3 = arith.constant 0 : index
    %10 = vector.load %arg4[%c1, %c0_3] : memref<9x256xf32, #tpu.memory_space<vmem>>, vector<1x256xf32>
    %11 = vector.shape_cast %10 : vector<1x256xf32> to vector<256xf32>
    %12 = vector.shape_cast %11 : vector<256xf32> to vector<1x256xf32>
    %13 = vector.broadcast %12 : vector<1x256xf32> to vector<8x256xf32>
    %14 = arith.mulf %9, %13 : vector<8x256xf32>
    %c15_i32 = arith.constant 15 : i32
    %15 = tpu.dynamic_rotate %2 by %c15_i32 dim 1 : vector<8x256xf32>, i32 -> vector<8x256xf32>
    %c2 = arith.constant 2 : index
    %c0_4 = arith.constant 0 : index
    %16 = vector.load %arg4[%c2, %c0_4] : memref<9x256xf32, #tpu.memory_space<vmem>>, vector<1x256xf32>
    %17 = vector.shape_cast %16 : vector<1x256xf32> to vector<256xf32>
    %18 = vector.shape_cast %17 : vector<256xf32> to vector<1x256xf32>
    %19 = vector.broadcast %18 : vector<1x256xf32> to vector<8x256xf32>
    %20 = arith.mulf %15, %19 : vector<8x256xf32>
    %c1_i32 = arith.constant 1 : i32
    %21 = tpu.dynamic_rotate %2 by %c1_i32 dim 1 : vector<8x256xf32>, i32 -> vector<8x256xf32>
    %c3 = arith.constant 3 : index
    %c0_5 = arith.constant 0 : index
    %22 = vector.load %arg4[%c3, %c0_5] : memref<9x256xf32, #tpu.memory_space<vmem>>, vector<1x256xf32>
    %23 = vector.shape_cast %22 : vector<1x256xf32> to vector<256xf32>
    %24 = vector.shape_cast %23 : vector<256xf32> to vector<1x256xf32>
    %25 = vector.broadcast %24 : vector<1x256xf32> to vector<8x256xf32>
    %26 = arith.mulf %21, %25 : vector<8x256xf32>
    %c255_i32 = arith.constant 255 : i32
    %27 = tpu.dynamic_rotate %2 by %c255_i32 dim 1 : vector<8x256xf32>, i32 -> vector<8x256xf32>
    %c5 = arith.constant 5 : index
    %c0_6 = arith.constant 0 : index
    %28 = vector.load %arg4[%c5, %c0_6] : memref<9x256xf32, #tpu.memory_space<vmem>>, vector<1x256xf32>
    %29 = vector.shape_cast %28 : vector<1x256xf32> to vector<256xf32>
    %30 = vector.shape_cast %29 : vector<256xf32> to vector<1x256xf32>
    %31 = vector.broadcast %30 : vector<1x256xf32> to vector<8x256xf32>
    %32 = arith.mulf %27, %31 : vector<8x256xf32>
    %c241_i32 = arith.constant 241 : i32
    %33 = tpu.dynamic_rotate %2 by %c241_i32 dim 1 : vector<8x256xf32>, i32 -> vector<8x256xf32>
    %c6 = arith.constant 6 : index
    %c0_7 = arith.constant 0 : index
    %34 = vector.load %arg4[%c6, %c0_7] : memref<9x256xf32, #tpu.memory_space<vmem>>, vector<1x256xf32>
    %35 = vector.shape_cast %34 : vector<1x256xf32> to vector<256xf32>
    %36 = vector.shape_cast %35 : vector<256xf32> to vector<1x256xf32>
    %37 = vector.broadcast %36 : vector<1x256xf32> to vector<8x256xf32>
    %38 = arith.mulf %33, %37 : vector<8x256xf32>
    %c240_i32 = arith.constant 240 : i32
    %39 = tpu.dynamic_rotate %2 by %c240_i32 dim 1 : vector<8x256xf32>, i32 -> vector<8x256xf32>
    %c7 = arith.constant 7 : index
    %c0_8 = arith.constant 0 : index
    %40 = vector.load %arg4[%c7, %c0_8] : memref<9x256xf32, #tpu.memory_space<vmem>>, vector<1x256xf32>
    %41 = vector.shape_cast %40 : vector<1x256xf32> to vector<256xf32>
    %42 = vector.shape_cast %41 : vector<256xf32> to vector<1x256xf32>
    %43 = vector.broadcast %42 : vector<1x256xf32> to vector<8x256xf32>
    %44 = arith.mulf %39, %43 : vector<8x256xf32>
    %c239_i32 = arith.constant 239 : i32
    %45 = tpu.dynamic_rotate %2 by %c239_i32 dim 1 : vector<8x256xf32>, i32 -> vector<8x256xf32>
    %c8 = arith.constant 8 : index
    %c0_9 = arith.constant 0 : index
    %46 = vector.load %arg4[%c8, %c0_9] : memref<9x256xf32, #tpu.memory_space<vmem>>, vector<1x256xf32>
    %47 = vector.shape_cast %46 : vector<1x256xf32> to vector<256xf32>
    %48 = vector.shape_cast %47 : vector<256xf32> to vector<1x256xf32>
    %49 = vector.broadcast %48 : vector<1x256xf32> to vector<8x256xf32>
    %50 = arith.mulf %45, %49 : vector<8x256xf32>
    %51 = tpu.concatenate %8, %14, %20, %26, %2, %32, %38, %44, %50 in 0 : vector<8x256xf32>, vector<8x256xf32>, vector<8x256xf32>, vector<8x256xf32>, vector<8x256xf32>, vector<8x256xf32>, vector<8x256xf32>, vector<8x256xf32>, vector<8x256xf32> -> vector<72x256xf32>
    %c0_10 = arith.constant 0 : index
    %c0_11 = arith.constant 0 : index
    %52 = vector.load %arg2[%c0_10, %c0_11] : memref<8x72xf32, #tpu.memory_space<vmem>>, vector<8x72xf32>
    %cst_12 = arith.constant dense<0.000000e+00> : vector<8x256xf32>
    %53 = tpu.matmul %52, %51, %cst_12 {dimension_numbers = #tpu.dot_dimension_numbers<[1], [0], [0], [1], [0, 0, 1, 1], [], []>} : vector<8x72xf32>, vector<72x256xf32>, vector<8x256xf32> -> vector<8x256xf32>
    %cst_13 = arith.constant 0.000000e+00 : f32
    %54 = vector.broadcast %cst_13 : f32 to vector<8x256xf32>
    %55 = arith.maximumf %53, %54 : vector<8x256xf32>
    %c0_14 = arith.constant 0 : index
    %c0_15 = arith.constant 0 : index
    %56 = vector.load %arg3[%c0_14, %c0_15] : memref<8x8xf32, #tpu.memory_space<vmem>>, vector<8x8xf32>
    %cst_16 = arith.constant dense<0.000000e+00> : vector<8x256xf32>
    %57 = tpu.matmul %56, %55, %cst_16 {dimension_numbers = #tpu.dot_dimension_numbers<[1], [0], [0], [1], [0, 0, 1, 1], [], []>} : vector<8x8xf32>, vector<8x256xf32>, vector<8x256xf32> -> vector<8x256xf32>
    %58 = arith.addf %0, %57 : vector<8x256xf32>
    %c0_17 = arith.constant 0 : index
    %c0_18 = arith.constant 0 : index
    %59 = vector.load %arg5[%c0_17, %c0_18] : memref<8x256xf32, #tpu.memory_space<vmem>>, vector<8x256xf32>
    tpu.vector_store %arg5[%c0_17, %c0_18], %58 {strides = array<i32>} : memref<8x256xf32, #tpu.memory_space<vmem>>, vector<8x256xf32>,
    return
  }
  func.func @transform_0(%arg0: i32) -> (i32, i32) {
    %c0_i32 = arith.constant 0 : i32
    %c0_i32_0 = arith.constant 0 : i32
    return %c0_i32, %arg0 : i32, i32
  }
  func.func @transform_1(%arg0: i32) -> (i32, i32) {
    %c0_i32 = arith.constant 0 : i32
    %c0_i32_0 = arith.constant 0 : i32
    %c0_i32_1 = arith.constant 0 : i32
    return %c0_i32, %c0_i32_0 : i32, i32
  }
  func.func @transform_2(%arg0: i32) -> (i32, i32) {
    %c0_i32 = arith.constant 0 : i32
    %c0_i32_0 = arith.constant 0 : i32
    %c0_i32_1 = arith.constant 0 : i32
    return %c0_i32, %c0_i32_0 : i32, i32
  }
  func.func @transform_3(%arg0: i32) -> (i32, i32) {
    %c0_i32 = arith.constant 0 : i32
    %c0_i32_0 = arith.constant 0 : i32
    %c0_i32_1 = arith.constant 0 : i32
    return %c0_i32, %c0_i32_0 : i32, i32
  }
  func.func @transform_4(%arg0: i32) -> (i32, i32) {
    %c0_i32 = arith.constant 0 : i32
    %c0_i32_0 = arith.constant 0 : i32
    return %c0_i32, %arg0 : i32, i32
  }
}

</mosaic_0001>

<llo_original>
// kernel: tpu_custom_call.1
$region0: #{tpu_custom_call.1}
  #allocation0 [shape = 'u32[]', space=smem, size = 0x4, offset = 0x4, fixed_abs, tag = 'smem constant byte address 0x4 - core index']
  #allocation1 [shape = 'u32[144,128]{1,0:T(1,128)}', space=vmem, size = 0x12000, scoped, tag = 'internal scratch']
  %s0 = inlined_call_operand.hbm [shape: f32[8,512], index: 0, kind: input, shape index: {}]
  %s1 = inlined_call_operand.hbm [shape: f32[8,72], index: 1, kind: input, shape index: {}]
  %s2 = inlined_call_operand.hbm [shape: f32[8,8], index: 2, kind: input, shape index: {}]
  %s3 = inlined_call_operand.hbm [shape: f32[9,256], index: 3, kind: input, shape index: {}]
  %s4 = inlined_call_operand.hbm [shape: f32[8,512], index: 4, kind: output, shape index: {}]
  %s5 = sld [smem:[#allocation0]]
  $region65: #{tpu_custom_call.1} parent=0
    _
  %s7 = ssub.s32 1, %s5
  %s8 = scalar_select 0, %s7, %s5
  $region1: #{tpu_custom_call.1} parent=0
    #allocation2 [shape = 'u8[16384]{0}', space=vmem, size = 0x4000, scoped, tag = 'input window, operand 0']
    #allocation3 [shape = 's32[2]{0}', space=sflag, size = 0x8, scoped, tag = 'scoped memory for tpu_custom_call.1']
    #allocation4 [shape = 's32[2]{0}', space=sflag, size = 0x8, scoped, tag = 'scoped memory for tpu_custom_call.1']
    #allocation5 [shape = 'u8[4096]{0}', space=vmem, size = 0x1000, scoped, tag = 'input window, operand 1, single buffered']
    #allocation6 [shape = 's32[1]{0}', space=sflag, size = 0x4, scoped, tag = 'scoped memory for tpu_custom_call.1']
    #allocation7 [shape = 'u8[4096]{0}', space=vmem, size = 0x1000, scoped, tag = 'input window, operand 2, single buffered']
    #allocation8 [shape = 'u8[16384]{0}', space=vmem, size = 0x4000, scoped, tag = 'input window, operand 3, single buffered']
    #allocation9 [shape = 's32[1]{0}', space=sflag, size = 0x4, scoped, tag = 'scoped memory for tpu_custom_call.1']
    #allocation10 [shape = 'u8[16384]{0}', space=vmem, size = 0x4000, scoped, tag = 'output window, operand 0']
    %9 = vsyncpa [#allocation3], 0
    %s10 = scalar_lea.sflag [#allocation3], 1
    %11 = vsyncpa %s10, 0
    %12 = vsyncpa [#allocation6], 0
    %13 = vsyncpa [#allocation9], 0
    %14 = vsyncpa [#allocation4], 0
    %s15 = scalar_lea.sflag [#allocation4], 1
    %16 = vsyncpa %s15, 0
    loop: start=0, step=1, limit=4
    $region2: #{tpu_custom_call.1} parent=1 // loop_pre_header
      _
    $region3: #{tpu_custom_call.1} parent=1 // loop_header
      %s18 = sphi 0, %s22
      %p19 = scmp.ge.s32.totalorder %s18, 4
      %s28 = sphi 0, %s30
      %s31 = sphi 0, %s28
      %s32 = sphi 0, %s31
      %s48 = sphi 0, %s32
      %s52 = sphi 0, %s52
      %s54 = sphi 0, %s52
      %s55 = sphi 0, %s54
      %s69 = sphi 0, %s55
      %s73 = sphi 0, %s73
      %s75 = sphi 0, %s73
      %s76 = sphi 0, %s75
      %s90 = sphi 0, %s76
      %s94 = sphi 0, %s94
      %s96 = sphi 0, %s94
      %s97 = sphi 0, %s96
      %s111 = sphi 0, %s97
      %s117 = sphi 0, %s119
      %s120 = sphi 0, %s117
      %s121 = sphi 0, %s120
      %s137 = sphi 0, %s121
    $region4: #{tpu_custom_call.1} parent=1 // loop_header_branch
      %21 = sbr.rel (%p19) target = $region8
    $region5: #{tpu_custom_call.1} parent=1 // loop_body
      %s23 = ssub.s32 %s18, 1
      %s24 = ssub.s32 %s18, 2
      %s25 = sadd.s32 %s18, 1
      %s26 = ssub.s32 %s18, %s25
      %p27 = scmp.eq.s32.totalorder %s26, 0
      %s29 = sadd.s32 %s28, 1
      %s30 = scalar_select %p27, %s28, %s29
      %p33 = pneg %p27
      %p34 = scmp.eq.s32.totalorder %s18, 1
      %p35 = por %p33, %p34
      %p36 = scmp.ne.s32.totalorder %s28, %s31
      %p37 = scmp.eq.s32.totalorder %s18, 0
      %p38 = por %p36, %p37
      %p39 = scmp.ne.s32.totalorder %s28, %s31
      %p40 = scmp.eq.s32.totalorder %s23, 1
      %p41 = por %p39, %p40
      %p42 = scmp.ne.s32.totalorder %s31, %s32
      %p43 = scmp.eq.s32.totalorder %s23, 0
      %p44 = por %p42, %p43
      %p45 = scmp.ne.s32.totalorder %s31, %s32
      %p46 = scmp.eq.s32.totalorder %s24, 1
      %p47 = por %p45, %p46
      %p49 = scmp.ne.s32.totalorder %s32, %s48
      %p50 = scmp.eq.s32.totalorder %s24, 0
      %p51 = por %p49, %p50
      %s53 = sadd.s32 %s52, 1
      %p56 = scmp.eq.s32.totalorder %s18, 1
      %p57 = scmp.ne.s32.totalorder %s52, %s54
      %p58 = scmp.eq.s32.totalorder %s18, 0
      %p59 = por %p57, %p58
      %p60 = scmp.ne.s32.totalorder %s52, %s54
      %p61 = scmp.eq.s32.totalorder %s23, 1
      %p62 = por %p60, %p61
      %p63 = scmp.ne.s32.totalorder %s54, %s55
      %p64 = scmp.eq.s32.totalorder %s23, 0
      %p65 = por %p63, %p64
      %p66 = scmp.ne.s32.totalorder %s54, %s55
      %p67 = scmp.eq.s32.totalorder %s24, 1
      %p68 = por %p66, %p67
      %p70 = scmp.ne.s32.totalorder %s55, %s69
      %p71 = scmp.eq.s32.totalorder %s24, 0
      %p72 = por %p70, %p71
      %s74 = sadd.s32 %s73, 1
      %p77 = scmp.eq.s32.totalorder %s18, 1
      %p78 = scmp.ne.s32.totalorder %s73, %s75
      %p79 = scmp.eq.s32.totalorder %s18, 0
      %p80 = por %p78, %p79
      %p81 = scmp.ne.s32.totalorder %s73, %s75
      %p82 = scmp.eq.s32.totalorder %s23, 1
      %p83 = por %p81, %p82
      %p84 = scmp.ne.s32.totalorder %s75, %s76
      %p85 = scmp.eq.s32.totalorder %s23, 0
      %p86 = por %p84, %p85
      %p87 = scmp.ne.s32.totalorder %s75, %s76
      %p88 = scmp.eq.s32.totalorder %s24, 1
      %p89 = por %p87, %p88
      %p91 = scmp.ne.s32.totalorder %s76, %s90
      %p92 = scmp.eq.s32.totalorder %s24, 0
      %p93 = por %p91, %p92
      %s95 = sadd.s32 %s94, 1
      %p98 = scmp.eq.s32.totalorder %s18, 1
      %p99 = scmp.ne.s32.totalorder %s94, %s96
      %p100 = scmp.eq.s32.totalorder %s18, 0
      %p101 = por %p99, %p100
      %p102 = scmp.ne.s32.totalorder %s94, %s96
      %p103 = scmp.eq.s32.totalorder %s23, 1
      %p104 = por %p102, %p103
      %p105 = scmp.ne.s32.totalorder %s96, %s97
      %p106 = scmp.eq.s32.totalorder %s23, 0
      %p107 = por %p105, %p106
      %p108 = scmp.ne.s32.totalorder %s96, %s97
      %p109 = scmp.eq.s32.totalorder %s24, 1
      %p110 = por %p108, %p109
      %p112 = scmp.ne.s32.totalorder %s97, %s111
      %p113 = scmp.eq.s32.totalorder %s24, 0
      %p114 = por %p112, %p113
      %s115 = ssub.s32 %s18, %s25
      %p116 = scmp.eq.s32.totalorder %s115, 0
      %s118 = sadd.s32 %s117, 1
      %s119 = scalar_select %p116, %s117, %s118
      %p122 = pneg %p116
      %p123 = scmp.eq.s32.totalorder %s18, 1
      %p124 = por %p122, %p123
      %p125 = scmp.ne.s32.totalorder %s117, %s120
      %p126 = scmp.eq.s32.totalorder %s18, 0
      %p127 = por %p125, %p126
      %p128 = scmp.ne.s32.totalorder %s117, %s120
      %p129 = scmp.eq.s32.totalorder %s23, 1
      %p130 = por %p128, %p129
      %p131 = scmp.ne.s32.totalorder %s120, %s121
      %p132 = scmp.eq.s32.totalorder %s23, 0
      %p133 = por %p131, %p132
      %p134 = scmp.ne.s32.totalorder %s120, %s121
      %p135 = scmp.eq.s32.totalorder %s24, 1
      %p136 = por %p134, %p135
      %p138 = scmp.ne.s32.totalorder %s121, %s137
      %p139 = scmp.eq.s32.totalorder %s24, 0
      %p140 = por %p138, %p139
      %p141 = scmp.le.s32.totalorder 1, %s18
      %p142 = scmp.lt.s32.totalorder %s18, 3
      %p143 = pnand %p141, %p142
      %p144 = pneg %p143
      // Predicated region
      $region9: #{tpu_custom_call.1} parent=5 // pred_check
        _
      $region10: #{tpu_custom_call.1} parent=5 // pred_check_branch
        %146 = sbr.rel (%p143) target = $region12
      $region11: #{tpu_custom_call.1} parent=5 // pred_region
        %s147 = ssub.s32 %s18, 1
        // Predicated region
        $region13: #{tpu_custom_call.1} parent=11 // pred_check
          %p148 = pneg %p65
        $region14: #{tpu_custom_call.1} parent=11 // pred_check_branch
          %150 = sbr.rel (%p148) target = $region16
        $region15: #{tpu_custom_call.1} parent=11 // pred_region
          %s152 = ssub.s32 128, 128
          %153 = vsyncadd [#allocation6], %s152
          %s155 = sshll.u32 [#allocation5], 4
          %s156 = int_to_ptr.vmem [resolvable:$true] %s155
          %158 = dma.hbm_to_vmem [thread:$0]  %s1, 128, %s156, [#allocation6]
        $region16: #{tpu_custom_call.1} parent=11 // pred_fallthru
          _
        // Predicated region
        $region17: #{tpu_custom_call.1} parent=11 // pred_check
          %p159 = pneg %p86
        $region18: #{tpu_custom_call.1} parent=11 // pred_check_branch
          %161 = sbr.rel (%p159) target = $region20
        $region19: #{tpu_custom_call.1} parent=11 // pred_region
          %s163 = ssub.s32 128, 128
          %164 = vsyncadd [#allocation6], %s163
          %s166 = sshll.u32 [#allocation7], 4
          %s167 = int_to_ptr.vmem [resolvable:$true] %s166
          %169 = dma.hbm_to_vmem [thread:$0]  %s2, 128, %s167, [#allocation6]
        $region20: #{tpu_custom_call.1} parent=11 // pred_fallthru
          _
        // Predicated region
        $region21: #{tpu_custom_call.1} parent=11 // pred_check
          %p170 = pneg %p107
        $region22: #{tpu_custom_call.1} parent=11 // pred_check_branch
          %172 = sbr.rel (%p170) target = $region24
        $region23: #{tpu_custom_call.1} parent=11 // pred_region
          %s174 = ssub.s32 512, 512
          %175 = vsyncadd [#allocation9], %s174
          %s176 = sshll.u32 [#allocation8], 4
          %s177 = int_to_ptr.vmem [resolvable:$true] %s176
          %182 = dma.hbm_to_vmem [thread:$0]  %s3, 512, %s177, [#allocation9], 256, 256, 16
        $region24: #{tpu_custom_call.1} parent=11 // pred_fallthru
          _
      $region12: #{tpu_custom_call.1} parent=5 // pred_fallthru
        _
      %p183 = scmp.lt.s32.totalorder %s18, 2
      // Predicated region
      $region25: #{tpu_custom_call.1} parent=5 // pred_check
        %p184 = pneg %p183
      $region26: #{tpu_custom_call.1} parent=5 // pred_check_branch
        %186 = sbr.rel (%p184) target = $region28
      $region27: #{tpu_custom_call.1} parent=5 // pred_region
        // Predicated region
        $region29: #{tpu_custom_call.1} parent=27 // pred_check
          %p187 = pneg %p38
        $region30: #{tpu_custom_call.1} parent=27 // pred_check_branch
          %189 = sbr.rel (%p187) target = $region32
        $region31: #{tpu_custom_call.1} parent=27 // pred_region
          %s190 = sand.u32 %s28, 1
          %s191 = scalar_lea.sflag [#allocation3], %s190
          %s192 = sand.u32 %s28, 1
          %s193 = smul.addr %s192, 16
          %s194 = scalar_lea.vmem [#allocation2], %s193
          %s195 = smul.u32 2, %s18
          %s197 = ssub.s32 256, 256
          %198 = vsyncadd %s191, %s197
          %s199 = smul.addr %s195, 128
          %s200 = scalar_lea.hbm %s0, %s199
          %s202 = sshll.u32 %s194, 4
          %s203 = int_to_ptr.vmem [resolvable:$true] %s202
          %205 = dma.hbm_to_vmem [thread:$0]  %s200, 256, %s203, %s191
        $region32: #{tpu_custom_call.1} parent=27 // pred_fallthru
          _
      $region28: #{tpu_custom_call.1} parent=5 // pred_fallthru
        _
      %p206 = scmp.le.s32.totalorder 1, %s18
      %p207 = scmp.lt.s32.totalorder %s18, 3
      %p208 = pnand %p206, %p207
      %p209 = pneg %p208
      // Predicated region
      $region33: #{tpu_custom_call.1} parent=5 // pred_check
        _
      $region34: #{tpu_custom_call.1} parent=5 // pred_check_branch
        %211 = sbr.rel (%p208) target = $region36
      $region35: #{tpu_custom_call.1} parent=5 // pred_region
        %s212 = ssub.s32 %s18, 1
        %s213 = sand.u32 %s31, 1
        %s214 = scalar_lea.sflag [#allocation3], %s213
        %s215 = sand.u32 %s31, 1
        %s216 = smul.addr %s215, 16
        %s217 = scalar_lea.vmem [#allocation2], %s216
        // Predicated region
        $region37: #{tpu_custom_call.1} parent=35 // pred_check
          %p218 = pneg %p44
        $region38: #{tpu_custom_call.1} parent=35 // pred_check_branch
          %220 = sbr.rel (%p218) target = $region40
        $region39: #{tpu_custom_call.1} parent=35 // pred_region
          %221 = dma.done %s214, 256
        $region40: #{tpu_custom_call.1} parent=35 // pred_fallthru
          _
        // Predicated region
        $region41: #{tpu_custom_call.1} parent=35 // pred_check
          %p222 = pneg %p65
        $region42: #{tpu_custom_call.1} parent=35 // pred_check_branch
          %224 = sbr.rel (%p222) target = $region44
        $region43: #{tpu_custom_call.1} parent=35 // pred_region
          %225 = dma.done [#allocation6], 128
        $region44: #{tpu_custom_call.1} parent=35 // pred_fallthru
          _
        // Predicated region
        $region45: #{tpu_custom_call.1} parent=35 // pred_check
          %p226 = pneg %p86
        $region46: #{tpu_custom_call.1} parent=35 // pred_check_branch
          %228 = sbr.rel (%p226) target = $region48
        $region47: #{tpu_custom_call.1} parent=35 // pred_region
          %229 = dma.done [#allocation6], 128
        $region48: #{tpu_custom_call.1} parent=35 // pred_fallthru
          _
        // Predicated region
        $region49: #{tpu_custom_call.1} parent=35 // pred_check
          %p230 = pneg %p107
        $region50: #{tpu_custom_call.1} parent=35 // pred_check_branch
          %232 = sbr.rel (%p230) target = $region52
        $region51: #{tpu_custom_call.1} parent=35 // pred_region
          %233 = dma.done [#allocation9], 512
        $region52: #{tpu_custom_call.1} parent=35 // pred_fallthru
          _
        %s234 = sand.u32 %s31, 1
        %s235 = scalar_lea.sflag [#allocation3], %s234
        %s236 = sand.u32 %s31, 1
        %s237 = smul.addr %s236, 16
        %s238 = scalar_lea.vmem [#allocation2], %s237
        %p239 = pneg %p44
        %p240 = pneg %p41
        %p241 = pneg %p65
        %p242 = pneg %p62
        %p243 = pneg %p86
        %p244 = pneg %p83
        %p245 = pneg %p107
        %p246 = pneg %p104
        %p247 = pneg %p133
        %p248 = pneg %p130
        %s249 = sand.u32 %s120, 1
        %s250 = scalar_lea.sflag [#allocation4], %s249
        %s251 = sand.u32 %s120, 1
        %s252 = smul.addr %s251, 16
        %s253 = scalar_lea.vmem [#allocation10], %s252
        %s254 = smul.u32 2, %s23
        %s255 = smul.u32 2, %s23
        %v256 = vld [vmem:[%s217] sm:$0xff]
        %v257 = vld [vmem:[%s217 + $0x8] sm:$0xff]
        %v258 = vmax.f32 %v256, 0.0
        %v259 = vmax.f32 %v257, 0.0
        %260 = vrot.lane.b32.xlu0 %v258, 17
        %v261 = vpop.permute.xlu0 %260
        %262 = vrot.lane.b32.xlu0 %v259, 17
        %v263 = vpop.permute.xlu0 %262
        %v264 = vlaneseq
        %v265 = vand.u32 %v264, 127
        %vm266 = vcmp.lt.s32.totalorder %v265, 17
        %v267 = vsel %vm266, %v261, %v263
        %v268 = vsel %vm266, %v263, %v261
        %v269 = vld [vmem:[#allocation8] ss:$8 sm:$0x3]
        %v271 = vlaneseq
        %v272 = vshrl.u32 %v271, 7
        %v273 = vsub.s32 0, %v272
        %v274 = vrot.slane %v269, %v273
        %v275 = vlaneseq
        %v276 = vshrl.u32 %v275, 7
        %v277 = vsub.s32 1, %v276
        %v278 = vrot.slane %v269, %v277
        %v281 = vmul.f32 %v268, %v274
        %v282 = vmul.f32 %v267, %v278
        %283 = vrot.lane.b32.xlu0 %v258, 16
        %v284 = vpop.permute.xlu0 %283
        %285 = vrot.lane.b32.xlu0 %v259, 16
        %v286 = vpop.permute.xlu0 %285
        %vm287 = vcmp.lt.s32.totalorder %v265, 16
        %v288 = vsel %vm287, %v284, %v286
        %v289 = vsel %vm287, %v286, %v284
        %s290 = scalar_lea.vmem [#allocation8], 1
        %v291 = vld [vmem:[%s290] ss:$8 sm:$0x3]
        %v293 = vlaneseq
        %v294 = vshrl.u32 %v293, 7
        %v295 = vsub.s32 0, %v294
        %v296 = vrot.slane %v291, %v295
        %v297 = vlaneseq
        %v298 = vshrl.u32 %v297, 7
        %v299 = vsub.s32 1, %v298
        %v300 = vrot.slane %v291, %v299
        %v303 = vmul.f32 %v289, %v296
        %v304 = vmul.f32 %v288, %v300
        %305 = vrot.lane.b32.xlu0 %v258, 15
        %v306 = vpop.permute.xlu0 %305
        %307 = vrot.lane.b32.xlu0 %v259, 15
        %v308 = vpop.permute.xlu0 %307
        %vm309 = vcmp.lt.s32.totalorder %v265, 15
        %v310 = vsel %vm309, %v306, %v308
        %v311 = vsel %vm309, %v308, %v306
        %s312 = scalar_lea.vmem [#allocation8], 2
        %v313 = vld [vmem:[%s312] ss:$8 sm:$0x3]
        %v315 = vlaneseq
        %v316 = vshrl.u32 %v315, 7
        %v317 = vsub.s32 0, %v316
        %v318 = vrot.slane %v313, %v317
        %v319 = vlaneseq
        %v320 = vshrl.u32 %v319, 7
        %v321 = vsub.s32 1, %v320
        %v322 = vrot.slane %v313, %v321
        %v325 = vmul.f32 %v311, %v318
        %v326 = vmul.f32 %v310, %v322
        %327 = vrot.lane.b32.xlu0 %v258, 1
        %v328 = vpop.permute.xlu0 %327
        %329 = vrot.lane.b32.xlu0 %v259, 1
        %v330 = vpop.permute.xlu0 %329
        %vm331 = vcmp.lt.s32.totalorder %v265, 1
        %v332 = vsel %vm331, %v328, %v330
        %v333 = vsel %vm331, %v330, %v328
        %s334 = scalar_lea.vmem [#allocation8], 3
        %v335 = vld [vmem:[%s334] ss:$8 sm:$0x3]
        %v337 = vlaneseq
        %v338 = vshrl.u32 %v337, 7
        %v339 = vsub.s32 0, %v338
        %v340 = vrot.slane %v335, %v339
        %v341 = vlaneseq
        %v342 = vshrl.u32 %v341, 7
        %v343 = vsub.s32 1, %v342
        %v344 = vrot.slane %v335, %v343
        %v347 = vmul.f32 %v333, %v340
        %v348 = vmul.f32 %v332, %v344
        %349 = vrot.lane.b32.xlu0 %v258, 127
        %v350 = vpop.permute.xlu0 %349
        %351 = vrot.lane.b32.xlu0 %v259, 127
        %v352 = vpop.permute.xlu0 %351
        %vm353 = vcmp.lt.s32.totalorder %v265, 127
        %v354 = vsel %vm353, %v350, %v352
        %v355 = vsel %vm353, %v352, %v350
        %s356 = scalar_lea.vmem [#allocation8], 5
        %v357 = vld [vmem:[%s356] ss:$8 sm:$0x3]
        %v359 = vlaneseq
        %v360 = vshrl.u32 %v359, 7
        %v361 = vsub.s32 0, %v360
        %v362 = vrot.slane %v357, %v361
        %v363 = vlaneseq
        %v364 = vshrl.u32 %v363, 7
        %v365 = vsub.s32 1, %v364
        %v366 = vrot.slane %v357, %v365
        %v369 = vmul.f32 %v354, %v362
        %v370 = vmul.f32 %v355, %v366
        %371 = vrot.lane.b32.xlu0 %v258, 113
        %v372 = vpop.permute.xlu0 %371
        %373 = vrot.lane.b32.xlu0 %v259, 113
        %v374 = vpop.permute.xlu0 %373
        %vm375 = vcmp.lt.s32.totalorder %v265, 113
        %v376 = vsel %vm375, %v372, %v374
        %v377 = vsel %vm375, %v374, %v372
        %s378 = scalar_lea.vmem [#allocation8], 6
        %v379 = vld [vmem:[%s378] ss:$8 sm:$0x3]
        %v381 = vlaneseq
        %v382 = vshrl.u32 %v381, 7
        %v383 = vsub.s32 0, %v382
        %v384 = vrot.slane %v379, %v383
        %v385 = vlaneseq
        %v386 = vshrl.u32 %v385, 7
        %v387 = vsub.s32 1, %v386
        %v388 = vrot.slane %v379, %v387
        %v391 = vmul.f32 %v376, %v384
        %v392 = vmul.f32 %v377, %v388
        %393 = vrot.lane.b32.xlu0 %v258, 112
        %v394 = vpop.permute.xlu0 %393
        %395 = vrot.lane.b32.xlu0 %v259, 112
        %v396 = vpop.permute.xlu0 %395
        %vm397 = vcmp.lt.s32.totalorder %v265, 112
        %v398 = vsel %vm397, %v394, %v396
        %v399 = vsel %vm397, %v396, %v394
        %s400 = scalar_lea.vmem [#allocation8], 7
        %v401 = vld [vmem:[%s400] ss:$8 sm:$0x3]
        %v403 = vlaneseq
        %v404 = vshrl.u32 %v403, 7
        %v405 = vsub.s32 0, %v404
        %v406 = vrot.slane %v401, %v405
        %v407 = vlaneseq
        %v408 = vshrl.u32 %v407, 7
        %v409 = vsub.s32 1, %v408
        %v410 = vrot.slane %v401, %v409
        %v413 = vmul.f32 %v398, %v406
        %v414 = vmul.f32 %v399, %v410
        %415 = vrot.lane.b32.xlu0 %v258, 111
        %v416 = vpop.permute.xlu0 %415
        %417 = vrot.lane.b32.xlu0 %v259, 111
        %v418 = vpop.permute.xlu0 %417
        %vm419 = vcmp.lt.s32.totalorder %v265, 111
        %v420 = vsel %vm419, %v416, %v418
        %v421 = vsel %vm419, %v418, %v416
        %s422 = scalar_lea.vmem [#allocation8], 16
        %v423 = vld [vmem:[%s422] ss:$8 sm:$0x3]
        %v425 = vlaneseq
        %v426 = vshrl.u32 %v425, 7
        %v427 = vsub.s32 0, %v426
        %v428 = vrot.slane %v423, %v427
        %v429 = vlaneseq
        %v430 = vshrl.u32 %v429, 7
        %v431 = vsub.s32 1, %v430
        %v432 = vrot.slane %v423, %v431
        %v435 = vmul.f32 %v420, %v428
        %v436 = vmul.f32 %v421, %v432
        %v437 = vld [vmem:[#allocation5] sm:$0xff]
        %vm438 = vcmask 588800
        %v440 = vsel %vm438, %v437, 0
        %442 = vmatprep.subr.mxu0 %v282
        %443 = vmatpush1.msra.mxu0 %v281
        %444 = vmatprep.subr.mxu0 %v304
        %445 = vmatpush1.msra.mxu0 %v303
        %446 = vmatprep.subr.mxu0 %v326
        %447 = vmatpush1.msra.mxu0 %v325
        %448 = vmatprep.subr.mxu0 %v348
        %449 = vmatpush1.msra.mxu0 %v347
        %450 = vmatprep.subr.mxu0 %v259
        %451 = vmatpush1.msra.mxu0 %v258
        %452 = vmatprep.subr.mxu0 %v370
        %453 = vmatpush1.msra.mxu0 %v369
        %454 = vmatprep.subr.mxu0 %v392
        %455 = vmatpush1.msra.mxu0 %v391
        %456 = vmatprep.subr.mxu0 %v414
        %457 = vmatpush1.msra.mxu0 %v413
        %458 = vmatprep.subr.mxu0 %v436
        %459 = vmatpush1.msra.mxu0 %v435
        %460 = vmatprep.subr.mxu0 0.0
        %461 = vmatpush1.msra.mxu0 0.0
        %462 = vmatprep.subr.mxu0 0.0
        %463 = vmatpush1.msra.mxu0 0.0
        %464 = vmatprep.subr.mxu0 0.0
        %465 = vmatpush1.msra.mxu0 0.0
        %466 = vmatprep.subr.mxu0 0.0
        %467 = vmatpush1.msra.mxu0 0.0
        %468 = vmatprep.subr.mxu0 0.0
        %469 = vmatpush1.msra.mxu0 0.0
        %470 = vmatprep.subr.mxu0 0.0
        %471 = vmatpush1.msra.mxu0 0.0
        %472 = vmatprep.subr.mxu0 0.0
        %473 = vmatpush1.msra.mxu0 0.0
        %474 = vmatprep.subr.mxu0 0.0
        %475 = vmatpush1.msra.mxu0 0.0
        %476 = vmatprep.subr.mxu0 0.0
        %477 = vmatpush1.msra.mxu0 0.0
        %478 = vmatprep.subr.mxu0 0.0
        %479 = vmatpush1.msra.mxu0 0.0
        %480 = vmatprep.subr.mxu0 0.0
        %481 = vmatpush1.msra.mxu0 0.0
        %482 = vmatprep.subr.mxu0 0.0
        %483 = vmatpush1.msra.mxu0 0.0
        %484 = vmatprep.subr.mxu0 0.0
        %485 = vmatpush1.msra.mxu0 0.0
        %486 = vmatprep.subr.mxu0 0.0
        %487 = vmatpush1.msra.mxu0 0.0
        %488 = vmatprep.subr.mxu0 0.0
        %489 = vmatpush1.msra.mxu0 0.0
        %490 = vmatprep.subr.mxu0 0.0
        %491 = vmatpush1.msra.mxu0 0.0
        %492 = vmatprep.subr.mxu0 0.0
        %493 = vmatpush1.msra.mxu0 0.0
        %494 = vmatprep.subr.mxu0 0.0
        %495 = vmatpush1.msra.mxu0 0.0
        %496 = vmatprep.subr.mxu0 0.0
        %497 = vmatpush1.msra.mxu0 0.0
        %498 = vmatprep.subr.mxu0 0.0
        %499 = vmatpush1.msra.mxu0 0.0
        %500 = vmatprep.subr.mxu0 0.0
        %501 = vmatpush1.msra.mxu0 0.0
        %502 = vmatprep.subr.mxu0 0.0
        %503 = vmatpush1.msra.mxu0 0.0
        %504 = vmatprep.subr.mxu0 0.0
        %505 = vmatpush1.msra.mxu0 0.0
        %506 = vmatprep.mubr.f32.mxu0 0.0
        %507 = vmatmul.mubr.f32.gmra.mrb[0].mxu0 %v440
        %v508 = vpop.f32.mrb[0].mxu0
        %v509 = vadd.f32 0.0, %v508
        %v510 = vpop.f32.mrb[0].mxu0
        %v511 = vadd.f32 0.0, %v510
        %512 = vdwg.mxu0
        %v513 = vmax.f32 %v509, 0.0
        %v514 = vmax.f32 %v511, 0.0
        %v515 = vld [vmem:[#allocation7] sm:$0xff]
        %vm516 = vcmask 64512
        %v518 = vsel %vm516, %v515, 0
        %520 = vmatprep.subr.mxu0 %v514
        %521 = vmatpush1.msra.mxu0 %v513
        %522 = vmatprep.subr.mxu0 0.0
        %523 = vmatpush1.msra.mxu0 0.0
        %524 = vmatprep.subr.mxu0 0.0
        %525 = vmatpush1.msra.mxu0 0.0
        %526 = vmatprep.subr.mxu0 0.0
        %527 = vmatpush1.msra.mxu0 0.0
        %528 = vmatprep.subr.mxu0 0.0
        %529 = vmatpush1.msra.mxu0 0.0
        %530 = vmatprep.subr.mxu0 0.0
        %531 = vmatpush1.msra.mxu0 0.0
        %532 = vmatprep.subr.mxu0 0.0
        %533 = vmatpush1.msra.mxu0 0.0
        %534 = vmatprep.subr.mxu0 0.0
        %535 = vmatpush1.msra.mxu0 0.0
        %536 = vmatprep.subr.mxu0 0.0
        %537 = vmatpush1.msra.mxu0 0.0
        %538 = vmatprep.subr.mxu0 0.0
        %539 = vmatpush1.msra.mxu0 0.0
        %540 = vmatprep.subr.mxu0 0.0
        %541 = vmatpush1.msra.mxu0 0.0
        %542 = vmatprep.subr.mxu0 0.0
        %543 = vmatpush1.msra.mxu0 0.0
        %544 = vmatprep.subr.mxu0 0.0
        %545 = vmatpush1.msra.mxu0 0.0
        %546 = vmatprep.subr.mxu0 0.0
        %547 = vmatpush1.msra.mxu0 0.0
        %548 = vmatprep.subr.mxu0 0.0
        %549 = vmatpush1.msra.mxu0 0.0
        %550 = vmatprep.subr.mxu0 0.0
        %551 = vmatpush1.msra.mxu0 0.0
        %552 = vmatprep.subr.mxu0 0.0
        %553 = vmatpush1.msra.mxu0 0.0
        %554 = vmatprep.subr.mxu0 0.0
        %555 = vmatpush1.msra.mxu0 0.0
        %556 = vmatprep.subr.mxu0 0.0
        %557 = vmatpush1.msra.mxu0 0.0
        %558 = vmatprep.subr.mxu0 0.0
        %559 = vmatpush1.msra.mxu0 0.0
        %560 = vmatprep.subr.mxu0 0.0
        %561 = vmatpush1.msra.mxu0 0.0
        %562 = vmatprep.subr.mxu0 0.0
        %563 = vmatpush1.msra.mxu0 0.0
        %564 = vmatprep.subr.mxu0 0.0
        %565 = vmatpush1.msra.mxu0 0.0
        %566 = vmatprep.subr.mxu0 0.0
        %567 = vmatpush1.msra.mxu0 0.0
        %568 = vmatprep.subr.mxu0 0.0
        %569 = vmatpush1.msra.mxu0 0.0
        %570 = vmatprep.subr.mxu0 0.0
        %571 = vmatpush1.msra.mxu0 0.0
        %572 = vmatprep.subr.mxu0 0.0
        %573 = vmatpush1.msra.mxu0 0.0
        %574 = vmatprep.subr.mxu0 0.0
        %575 = vmatpush1.msra.mxu0 0.0
        %576 = vmatprep.subr.mxu0 0.0
        %577 = vmatpush1.msra.mxu0 0.0
        %578 = vmatprep.subr.mxu0 0.0
        %579 = vmatpush1.msra.mxu0 0.0
        %580 = vmatprep.subr.mxu0 0.0
        %581 = vmatpush1.msra.mxu0 0.0
        %582 = vmatprep.subr.mxu0 0.0
        %583 = vmatpush1.msra.mxu0 0.0
        %584 = vmatprep.mubr.f32.mxu0 0.0
        %585 = vmatmul.mubr.f32.gmra.mrb[0].mxu0 %v518
        %v586 = vpop.f32.mrb[0].mxu0
        %v587 = vadd.f32 0.0, %v586
        %v588 = vpop.f32.mrb[0].mxu0
        %v589 = vadd.f32 0.0, %v588
        %590 = vdwg.mxu0
        %v591 = vadd.f32 %v256, %v587
        %v592 = vadd.f32 %v257, %v589
        %593 = vst [vmem:[%s253] sm:$0xff] %v591
        %594 = vst [vmem:[%s253 + $0x8] sm:$0xff] %v592
        %s595 = sand.u32 %s120, 1
        %s596 = scalar_lea.sflag [#allocation4], %s595
        %s597 = sand.u32 %s120, 1
        %s598 = smul.addr %s597, 16
        %s599 = scalar_lea.vmem [#allocation10], %s598
        // Predicated region
        $region53: #{tpu_custom_call.1} parent=35 // pred_check
          %p600 = pneg %p130
        $region54: #{tpu_custom_call.1} parent=35 // pred_check_branch
          %602 = sbr.rel (%p600) target = $region56
        $region55: #{tpu_custom_call.1} parent=35 // pred_region
          %s603 = smul.u32 2, %s23
          %s605 = ssub.s32 256, 256
          %606 = vsyncadd %s596, %s605
          %s607 = smul.addr %s603, 128
          %s608 = scalar_lea.hbm %s4, %s607
          %s610 = sshll.u32 %s599, 4
          %s611 = int_to_ptr.vmem [resolvable:$true] %s610
          %613 = dma.vmem_to_hbm [thread:$0]  %s611, 256, %s608, %s596
        $region56: #{tpu_custom_call.1} parent=35 // pred_fallthru
          _
      $region36: #{tpu_custom_call.1} parent=5 // pred_fallthru
        _
      %p614 = scmp.le.s32.totalorder 2, %s18
      // Predicated region
      $region57: #{tpu_custom_call.1} parent=5 // pred_check
        %p615 = pneg %p614
      $region58: #{tpu_custom_call.1} parent=5 // pred_check_branch
        %617 = sbr.rel (%p615) target = $region60
      $region59: #{tpu_custom_call.1} parent=5 // pred_region
        %s618 = ssub.s32 %s18, 2
        // Predicated region
        $region61: #{tpu_custom_call.1} parent=59 // pred_check
          %p619 = pneg %p136
        $region62: #{tpu_custom_call.1} parent=59 // pred_check_branch
          %621 = sbr.rel (%p619) target = $region64
        $region63: #{tpu_custom_call.1} parent=59 // pred_region
          %s622 = sand.u32 %s121, 1
          %s623 = scalar_lea.sflag [#allocation4], %s622
          %s624 = sand.u32 %s121, 1
          %s625 = smul.addr %s624, 16
          %s626 = scalar_lea.vmem [#allocation10], %s625
          %627 = dma.done %s623, 256
        $region64: #{tpu_custom_call.1} parent=59 // pred_fallthru
          _
      $region60: #{tpu_custom_call.1} parent=5 // pred_fallthru
        _
    $region6: #{tpu_custom_call.1} parent=1 // loop_footer
      %s22 = sadd.s32 1, %s18
    $region7: #{tpu_custom_call.1} parent=1 // loop_footer_branch
      %17 = sbr.rel target = $region3
    $region8: #{tpu_custom_call.1} parent=1 // loop_exit
      _
    %628 = vsyncpa [#allocation3], 1
    %s629 = scalar_lea.sflag [#allocation3], 1
    %630 = vsyncpa %s629, 1
    %631 = vsyncpa [#allocation6], 1
    %632 = vsyncpa [#allocation9], 1
    %633 = vsyncpa [#allocation4], 1
    %s634 = scalar_lea.sflag [#allocation4], 1
    %635 = vsyncpa %s634, 1

</llo_original>
